<compile_context>
chip_gen: v5e
topology: v5e:2x2
jax: 0.10.0
libtpu: 0.0.40
codegen_flags: <defaults>
</compile_context>

<pallas_src>
import functools

import jax
import jax.numpy as jnp
from jax.experimental import pallas as pl
from jax.experimental.pallas import tpu as pltpu


# Flipped to False (see __main__) if this Pallas build rejects pl.Buffered(1).
_BUFFER_CONSTS = [True]

_NEG_INF = -1e30  # finite "additive -inf": exp underflows to exactly 0

_VMEM_LIMIT = [None]


def _round_up(x, m):
    return (x + m - 1) // m * m


def _const_spec(block_shape):
    """BlockSpec for a grid-invariant operand (weights / bias / LN affine / mask).

    The index_map is constant, so the block is fetched once; pl.Buffered(1)
    drops the (useless) second pipeline buffer for these operands.
    """
    index_map = lambda *_: (0,) * len(block_shape)
    if _BUFFER_CONSTS[0]:
        return pl.BlockSpec(block_shape, index_map, pipeline_mode=pl.Buffered(1))
    return pl.BlockSpec(block_shape, index_map)


def _vmem_limit_bytes():
    """Per-generation VMEM budget: ~75% of physical (96 MiB on v5e/v6e, 48 MiB on v7x)."""
    if _VMEM_LIMIT[0] is None:
        cap = 64 * 1024 * 1024
        try:
            cap = int(getattr(pltpu.get_tpu_info(), "vmem_capacity_bytes", cap))
        except Exception:
            pass
        _VMEM_LIMIT[0] = max(min(cap * 3 // 4, 100 * 1024 * 1024),
                             32 * 1024 * 1024)
    return _VMEM_LIMIT[0]


def _compiler_params(grid_rank=1):
    # "parallel" lets v7x shard the grid across both TensorCores.
    return pltpu.CompilerParams(
        dimension_semantics=("parallel",) * grid_rank,
        vmem_limit_bytes=_vmem_limit_bytes())


def _layer_norm(z, gamma, beta):
    """Row LayerNorm with centered (cancellation-safe) variance."""
    inv_d = 1.0 / z.shape[-1]
    mean = jnp.sum(z, axis=-1, keepdims=True) * inv_d
    zc = z - mean
    var = jnp.sum(zc * zc, axis=-1, keepdims=True) * inv_d
    return zc * jax.lax.rsqrt(var + 1e-5) * gamma + beta


# --------------------------------------------------------------------------
# Linear: 2-D tiled x @ W + b (feature embedding, score projection)
# --------------------------------------------------------------------------
def _linear_kernel(x_ref, w_ref, b_ref, o_ref, *, matmul_dtype):
    x = x_ref[...].astype(matmul_dtype)
    y = jnp.dot(x, w_ref[...], preferred_element_type=jnp.float32) + b_ref[...]
    o_ref[...] = y.astype(o_ref.dtype)


def linear(x2d, w, b, *, tm=512, tn_max=2048, matmul_dtype=jnp.float32):
    """Row- and output-column-tiled linear layer (handles any M / vocab size)."""
    m, d_in = x2d.shape
    d_out = w.shape[1]

    tm_eff = min(tm, _round_up(m, 8))          # cap the tile for tiny inputs
    m_pad = _round_up(m, tm_eff)
    if m_pad != m:
        x2d = jnp.pad(x2d, ((0, m_pad - m), (0, 0)))

    # Tile the output (lane) axis so huge vocab projections stay within VMEM.
    if d_out <= tn_max:
        tn, n_pad = d_out, d_out
    else:
        tn = tn_max                             # multiple of 128
        n_pad = _round_up(d_out, tn)
    w_p = w.astype(matmul_dtype)
    b_p = b.reshape(1, d_out).astype(jnp.float32)
    if n_pad != d_out:
        w_p = jnp.pad(w_p, ((0, 0), (0, n_pad - d_out)))
        b_p = jnp.pad(b_p, ((0, 0), (0, n_pad - d_out)))

    gi, gj = m_pad // tm_eff, n_pad // tn
    if gj == 1:
        w_spec, b_spec = _const_spec((d_in, tn)), _const_spec((1, tn))
    else:
        w_spec = pl.BlockSpec((d_in, tn), lambda i, j: (0, j))
        b_spec = pl.BlockSpec((1, tn), lambda i, j: (0, j))

    out = pl.pallas_call(
        functools.partial(_linear_kernel, matmul_dtype=matmul_dtype),
        out_shape=jax.ShapeDtypeStruct((m_pad, n_pad), x2d.dtype),
        grid_spec=pltpu.PrefetchScalarGridSpec(
            num_scalar_prefetch=0,
            grid=(gi, gj),
            in_specs=[pl.BlockSpec((tm_eff, d_in), lambda i, j: (i, 0)),
                      w_spec, b_spec],
            out_specs=pl.BlockSpec((tm_eff, tn), lambda i, j: (i, j)),
        ),
        compiler_params=_compiler_params(2),
        cost_estimate=pl.CostEstimate(
            flops=2 * m_pad * d_in * n_pad,
            transcendentals=0,
            bytes_accessed=4 * (m_pad * d_in + m_pad * n_pad + n_pad)
                           + jnp.dtype(matmul_dtype).itemsize * d_in * n_pad),
    )(x2d, w_p, b_p)
    return out[:m, :d_out]


# --------------------------------------------------------------------------
# Fused decoder layer: self-attn + cross-attn (Tk==1) + FFN + 3x LayerNorm
# --------------------------------------------------------------------------
def _decoder_layer_kernel(mask_ref, x_ref, cond_ref,
                          wqkv_ref, bqkv_ref, wo_ref, bo_ref, g1_ref, be1_ref,
                          wvc_ref, bvc_ref, woc_ref, boc_ref, g2_ref, be2_ref,
                          w1_ref, b1_ref, w2_ref, b2_ref, g3_ref, be3_ref,
                          o_ref, *, num_heads, matmul_dtype):
    """One full decoder layer for a block of `bb` batch elements.

    All layer weights are VMEM-resident (single-buffered). Activations and
    LayerNorm/softmax math stay in f32; matmul operands are cast to
    `matmul_dtype` (bf16 is the native MXU dtype on v5e/v6e/v7x).
    """
    bb, s, d = x_ref.shape
    dh = d // num_heads
    r = bb * s
    scale = 1.0 / (dh ** 0.5)
    cast = lambda a: a.astype(matmul_dtype)

    x = x_ref[...].astype(jnp.float32).reshape(r, d)

    # ---- self-attention: one fused QKV projection over all bb*S rows ------
    qkv = jnp.dot(cast(x), wqkv_ref[...],
                  preferred_element_type=jnp.float32) + bqkv_ref[...]
    qkv3 = qkv.reshape(bb, s, 3 * d)
    mask_b = mask_ref[...][None, :, :] + 1e-10   # hoisted out of head loop
    heads = []
    for h in range(num_heads):
        q_h = qkv3[:, :, h * dh:(h + 1) * dh]
        k_h = qkv3[:, :, d + h * dh:d + (h + 1) * dh]
        v_h = qkv3[:, :, 2 * d + h * dh:2 * d + (h + 1) * dh]
        sc = jnp.einsum('bsd,btd->bst', cast(q_h), cast(k_h),
                        preferred_element_type=jnp.float32) * scale + mask_b
        sc = sc - jnp.max(sc, axis=-1, keepdims=True)
        p = jnp.exp(sc)
        p = p / jnp.sum(p, axis=-1, keepdims=True)
        # TODO(synk): attention nn.Dropout runs in eval mode (identity).
        heads.append(jnp.einsum('bst,btd->bsd', cast(p), cast(v_h),
                                preferred_element_type=jnp.float32))
    # concat(heads) -> single full-contraction output projection.
    heads2d = jnp.concatenate(heads, axis=-1).reshape(r, d)
    attn = jnp.dot(cast(heads2d), wo_ref[...],
                   preferred_element_type=jnp.float32) + bo_ref[...]
    z = _layer_norm(x + attn, g1_ref[...], be1_ref[...])

    # ---- cross-attention, Tk == 1 fast path --------------------------------
    # softmax over a single key is identically 1, so the attention output is
    # (cond @ Wv + bv) @ Wo + bo broadcast over the sequence; Q/K projections,
    # scores, softmax and kv padding are skipped entirely.
    cond = cond_ref[...].astype(jnp.float32).reshape(bb, d)
    vrow = jnp.dot(cast(cond), wvc_ref[...],
                   preferred_element_type=jnp.float32) + bvc_ref[...]
    ctx = jnp.dot(cast(vrow), woc_ref[...],
                  preferred_element_type=jnp.float32) + boc_ref[...]   # (bb, D)
    z = _layer_norm((z.reshape(bb, s, d) + ctx[:, None, :]).reshape(r, d),
                    g2_ref[...], be2_ref[...])

    # ---- feedforward -------------------------------------------------------
    # r = bb*S is kept around <=128 rows by the wrapper, so the (r, F) hidden
    # temporary is small; chunk the hidden dim only if r*F grows very large.
    hid = jnp.maximum(
        jnp.dot(cast(z), w1_ref[...], preferred_element_type=jnp.float32)
        + b1_ref[...], 0.0)
    y = jnp.dot(cast(hid), w2_ref[...],
                preferred_element_type=jnp.float32) + b2_ref[...]
    # TODO(synk): nn.Dropout layers run in eval mode (identity) here.
    z = _layer_norm(z + y, g3_ref[...], be3_ref[...])

    o_ref[...] = z.reshape(bb, s, d).astype(o_ref.dtype)


def decoder_layer(seq, cond2d, mask, lp, num_heads, *, matmul_dtype=jnp.float32):
    """One fused decoder layer on (N, S, D) with cond (N, D)."""
    n, s, d = seq.shape
    sa, ca, fp = lp['self_attn'], lp['cross_attn'], lp['ffn']
    f = fp['w1'].shape[1]

    # Batch-block size: aim for ~128 rows per block to feed the MXU, but keep
    # >= 2 grid steps when the batch allows so both v7x TensorCores get work.
    bb = max(1, min(n, max(1, 128 // max(s, 1))))
    while bb > 1 and -(-n // bb) < 2:
        bb //= 2
    bb = max(bb, 1)
    n_pad = _round_up(n, bb)

    x = seq
    cond3 = cond2d[:, None, :]
    if n_pad != n:
        x = jnp.pad(x, ((0, n_pad - n), (0, 0), (0, 0)))
        cond3 = jnp.pad(cond3, ((0, n_pad - n), (0, 0), (0, 0)))

    wd = matmul_dtype
    itm = jnp.dtype(wd).itemsize
    wqkv = jnp.concatenate([sa['wq'], sa['wk'], sa['wv']], axis=1).astype(wd)
    bqkv = jnp.concatenate([sa['bq'], sa['bk'], sa['bv']]).reshape(1, 3 * d)

    out = pl.pallas_call(
        functools.partial(_decoder_layer_kernel, num_heads=num_heads,
                          matmul_dtype=wd),
        out_shape=jax.ShapeDtypeStruct((n_pad, s, d), seq.dtype),
        grid_spec=pltpu.PrefetchScalarGridSpec(
            num_scalar_prefetch=0,
            grid=(n_pad // bb,),
            in_specs=[
                _const_spec((s, s)),                                 # mask
                pl.BlockSpec((bb, s, d), lambda i: (i, 0, 0)),       # x
                pl.BlockSpec((bb, 1, d), lambda i: (i, 0, 0)),       # cond
                _const_spec((d, 3 * d)), _const_spec((1, 3 * d)),    # Wqkv
                _const_spec((d, d)), _const_spec((1, d)),            # Wo
                _const_spec((1, d)), _const_spec((1, d)),            # LN1
                _const_spec((d, d)), _const_spec((1, d)),            # cross Wv
                _const_spec((d, d)), _const_spec((1, d)),            # cross Wo
                _const_spec((1, d)), _const_spec((1, d)),            # LN2
                _const_spec((d, f)), _const_spec((1, f)),            # FFN W1
                _const_spec((f, d)), _const_spec((1, d)),            # FFN W2
                _const_spec((1, d)), _const_spec((1, d)),            # LN3
            ],
            out_specs=pl.BlockSpec((bb, s, d), lambda i: (i, 0, 0)),
        ),
        compiler_params=_compiler_params(1),
        cost_estimate=pl.CostEstimate(
            flops=(n_pad * s * d * (8 * d + 4 * f)
                   + 4 * n_pad * s * s * d + 4 * n_pad * d * d),
            transcendentals=n_pad * num_heads * s * s,
            bytes_accessed=(4 * (2 * n_pad * s * d + n_pad * d
                                 + s * s + 5 * f + 20 * d)
                            + itm * (6 * d * d + 2 * d * f))),
    )(mask, x, cond3,
      wqkv, bqkv,
      sa['wo'].astype(wd), sa['bo'].reshape(1, d),
      sa['gamma'].reshape(1, d), sa['beta'].reshape(1, d),
      ca['wv'].astype(wd), ca['bv'].reshape(1, d),
      ca['wo'].astype(wd), ca['bo'].reshape(1, d),
      ca['gamma'].reshape(1, d), ca['beta'].reshape(1, d),
      fp['w1'].astype(wd), fp['b1'].reshape(1, f),
      fp['w2'].astype(wd), fp['b2'].reshape(1, d),
      fp['gamma'].reshape(1, d), fp['beta'].reshape(1, d))
    return out[:n]


# --------------------------------------------------------------------------
# Full TransformerDecoder forward (Pallas kernels + light XLA glue)
# --------------------------------------------------------------------------
def decoder_forward(params, features, captions, *, matmul_dtype=jnp.float32):
    n, t = captions.shape
    d = params['caption_embedding'].shape[1]
    v = params['score_w'].shape[1]
    num_heads = params['num_heads']

    # TODO(synk): embedding gather + positional add stay in XLA (jnp.take);
    # a scalar-prefetch Element-BlockSpec gather kernel is possible but not
    # worthwhile at caption-length scale.
    cap = params['caption_embedding'][captions] + params['pos_encoding'][:t][None]

    cond = linear(features, params['feat_w'], params['feat_b'],
                  matmul_dtype=matmul_dtype)                       # (N, D)

    rows = jnp.arange(t)
    causal = jnp.where(rows[None, :] > rows[:, None], _NEG_INF, 0.0
                       ).astype(jnp.float32)

    out = cap
    for lp in params['layers']:
        out = decoder_layer(out, cond, causal, lp, num_heads,
                            matmul_dtype=matmul_dtype)
    scores = linear(out.reshape(n * t, d), params['score_w'], params['score_b'],
                    matmul_dtype=matmul_dtype)
    return scores.reshape(n, t, v)


# --------------------------------------------------------------------------
# Pure-JAX reference (mirrors the PyTorch forward, eval-mode dropout)
# --------------------------------------------------------------------------
def _ref_ln(z, gamma, beta):
    mu = z.mean(-1, keepdims=True)
    var = ((z - mu) ** 2).mean(-1, keepdims=True)
    return (z - mu) / jnp.sqrt(var + 1e-5) * gamma + beta


def _ref_mha(q_in, kv_in, mask, p, num_heads):
    n, s, d = q_in.shape
    tk = kv_in.shape[1]
    dh = d // num_heads
    q = (q_in @ p['wq'] + p['bq']).reshape(n, s, num_heads, dh).transpose(0, 2, 1, 3)
    k = (kv_in @ p['wk'] + p['bk']).reshape(n, tk, num_heads, dh).transpose(0, 2, 1, 3)
    v = (kv_in @ p['wv'] + p['bv']).reshape(n, tk, num_heads, dh).transpose(0, 2, 1, 3)
    sc = jnp.einsum('nhsd,nhtd->nhst', q, k) / (dh ** 0.5)
    if mask is not None:
        sc = sc + mask[None, None]
    a = jax.nn.softmax(sc + 1e-10, axis=-1)
    y = jnp.einsum('nhst,nhtd->nhsd', a, v)
    y = y.transpose(0, 2, 1, 3).reshape(n, s, d)
    return y @ p['wo'] + p['bo']


def ref_decoder_forward(params, features, captions):
    with jax.default_matmul_precision('highest'):
        t = captions.shape[1]
        num_heads = params['num_heads']
        cap = (params['caption_embedding'][captions]
               + params['pos_encoding'][:t][None])
        cond = (features @ params['feat_w'] + params['feat_b'])[:, None, :]
        rows = jnp.arange(t)
        causal = jnp.where(rows[None, :] > rows[:, None], _NEG_INF, 0.0
                           ).astype(jnp.float32)
        out = cap
        for lp in params['layers']:
            sa, ca, fp = lp['self_attn'], lp['cross_attn'], lp['ffn']
            out = _ref_ln(out + _ref_mha(out, out, causal, sa, num_heads),
                          sa['gamma'], sa['beta'])
            out = _ref_ln(out + _ref_mha(out, cond, None, ca, num_heads),
                          ca['gamma'], ca['beta'])
            hid = jnp.maximum(out @ fp['w1'] + fp['b1'], 0.0)
            out = _ref_ln(out + hid @ fp['w2'] + fp['b2'],
                          fp['gamma'], fp['beta'])
        return out @ params['score_w'] + params['score_b']


if __name__ == "__main__":
    # Small shapes consistent with the module: batch=2, caption length T=8,
    # embed_dim=128 (lane-dense), num_heads=4, num_layers=2, image-feature
    # dim=64, dim_feedforward=2048 (module default), vocab=128.
    N, T, D, H, L = 2, 8, 128, 4, 2
    D_IN, FF, VOCAB, MAX_LEN = 64, 2048, 128, 50

    key = jax.random.PRNGKey(0)
    keys = iter(jax.random.split(key, 96))

    def rnd(shape, scale=0.02):
        return scale * jax.random.normal(next(keys), shape, jnp.float32)

    def attn_params():
        return dict(wq=rnd((D, D)), bq=rnd((D,)), wk=rnd((D, D)), bk=rnd((D,)),
                    wv=rnd((D, D)), bv=rnd((D,)), wo=rnd((D, D)), bo=rnd((D,)),
                    gamma=1.0 + rnd((D,)), beta=rnd((D,)))

    # NB: biases / LN params get small random values (instead of the module's
    # zero/one init) purely to exercise those code paths in the kernels.
    params = dict(
        caption_embedding=rnd((VOCAB, D)),
        pos_encoding=rnd((MAX_LEN, D)),
        feat_w=rnd((D_IN, D)), feat_b=rnd((D,)),
        score_w=rnd((D, VOCAB)), score_b=rnd((VOCAB,)),
        layers=[dict(self_attn=attn_params(),
                     cross_attn=attn_params(),
                     ffn=dict(w1=rnd((D, FF)), b1=rnd((FF,)),
                              w2=rnd((FF, D)), b2=rnd((D,)),
                              gamma=1.0 + rnd((D,)), beta=rnd((D,))))
                for _ in range(L)],
        num_heads=H)

    features = jax.random.normal(next(keys), (N, D_IN), jnp.float32)
    captions = jax.random.randint(next(keys), (N, T), 0, VOCAB)

    def run(dtype):
        return jax.block_until_ready(
            decoder_forward(params, features, captions, matmul_dtype=dtype))

    try:
        scores = run(jnp.float32)
    except Exception:
        # Fallback: retry with plain (double-buffered) constant BlockSpecs in
        # case this Pallas build rejects pipeline_mode=pl.Buffered(1).
        _BUFFER_CONSTS[0] = False
        scores = run(jnp.float32)

    ref = jax.block_until_ready(ref_decoder_forward(params, features, captions))

    assert scores.shape == (N, T, VOCAB)
    err_f32 = float(jnp.max(jnp.abs(scores - ref)))
    assert jnp.allclose(scores, ref, atol=2e-4, rtol=2e-4), err_f32

    # bf16 matmul operands (native MXU dtype on v5e/v6e/v7x): same kernels,
    # weights cast in the wrappers, f32 accumulation; looser tolerance.
    scores_bf16 = run(jnp.bfloat16)
    err_bf16 = float(jnp.max(jnp.abs(scores_bf16 - ref)))
    assert jnp.allclose(scores_bf16, ref, atol=5e-2, rtol=5e-2), err_bf16

    print("KERNEL_OK")
</pallas_src>

<mosaic_0001>
module attributes {stable_mosaic.version = 11 : i64} {
  func.func @_linear_kernel(%arg0: i32, %arg1: i32, %arg2: memref<8x64xf32, #tpu.memory_space<vmem>>, %arg3: memref<64x128xf32, #tpu.memory_space<vmem>>, %arg4: memref<1x128xf32, #tpu.memory_space<vmem>>, %arg5: memref<8x128xf32, #tpu.memory_space<vmem>>) attributes {dimension_semantics = [#tpu.dimension_semantics<parallel>, #tpu.dimension_semantics<parallel>], iteration_bounds = array<i64: 1, 1>, scalar_prefetch = 0 : i64, scratch_operands = 0 : i64, tpu.core_type = #tpu.core_type<tc>, window_params = [{transform_indices = @transform_0, window_bounds = array<i64: 8, 64>}, {pipeline_mode = #tpu.pipeline_mode<synchronous>, transform_indices = @transform_1, window_bounds = array<i64: 64, 128>}, {pipeline_mode = #tpu.pipeline_mode<synchronous>, transform_indices = @transform_2, window_bounds = array<i64: 1, 128>}, {transform_indices = @transform_3, window_bounds = array<i64: 8, 128>}]} {
    %c0 = arith.constant 0 : index
    %c0_0 = arith.constant 0 : index
    %0 = vector.load %arg2[%c0, %c0_0] : memref<8x64xf32, #tpu.memory_space<vmem>>, vector<8x64xf32>
    %c0_1 = arith.constant 0 : index
    %c0_2 = arith.constant 0 : index
    %1 = vector.load %arg3[%c0_1, %c0_2] : memref<64x128xf32, #tpu.memory_space<vmem>>, vector<64x128xf32>
    %cst = arith.constant dense<0.000000e+00> : vector<8x128xf32>
    %2 = tpu.matmul %0, %1, %cst {dimension_numbers = #tpu.dot_dimension_numbers<[1], [0], [0], [1], [0, 0, 1, 1], [], []>} : vector<8x64xf32>, vector<64x128xf32>, vector<8x128xf32> -> vector<8x128xf32>
    %c0_3 = arith.constant 0 : index
    %c0_4 = arith.constant 0 : index
    %3 = vector.load %arg4[%c0_3, %c0_4] : memref<1x128xf32, #tpu.memory_space<vmem>>, vector<1x128xf32>
    %4 = vector.broadcast %3 : vector<1x128xf32> to vector<8x128xf32>
    %5 = arith.addf %2, %4 : vector<8x128xf32>
    %c0_5 = arith.constant 0 : index
    %c0_6 = arith.constant 0 : index
    %6 = vector.load %arg5[%c0_5, %c0_6] : memref<8x128xf32, #tpu.memory_space<vmem>>, vector<8x128xf32>
    tpu.vector_store %arg5[%c0_5, %c0_6], %5 {strides = array<i32>} : memref<8x128xf32, #tpu.memory_space<vmem>>, vector<8x128xf32>,
    return
  }
  func.func @transform_0(%arg0: i32, %arg1: i32) -> (i32, i32) {
    %c0_i32 = arith.constant 0 : i32
    %c0_i32_0 = arith.constant 0 : i32
    return %arg0, %c0_i32 : i32, i32
  }
  func.func @transform_1(%arg0: i32, %arg1: i32) -> (i32, i32) {
    %c0_i32 = arith.constant 0 : i32
    %c0_i32_0 = arith.constant 0 : i32
    %c0_i32_1 = arith.constant 0 : i32
    return %c0_i32, %c0_i32_0 : i32, i32
  }
  func.func @transform_2(%arg0: i32, %arg1: i32) -> (i32, i32) {
    %c0_i32 = arith.constant 0 : i32
    %c0_i32_0 = arith.constant 0 : i32
    %c0_i32_1 = arith.constant 0 : i32
    return %c0_i32, %c0_i32_0 : i32, i32
  }
  func.func @transform_3(%arg0: i32, %arg1: i32) -> (i32, i32) {
    %c0_i32 = arith.constant 0 : i32
    return %arg0, %arg1 : i32, i32
  }
}

module attributes {stable_mosaic.version = 11 : i64} {
  func.func @_linear_kernel(%arg0: i32, %arg1: i32, %arg2: memref<8x64xf32, #tpu.memory_space<vmem>>, %arg3: memref<64x128xf32, #tpu.memory_space<vmem>>, %arg4: memref<1x128xf32, #tpu.memory_space<vmem>>, %arg5: memref<8x128xf32, #tpu.memory_space<vmem>>) attributes {dimension_semantics = [#tpu.dimension_semantics<parallel>, #tpu.dimension_semantics<parallel>], iteration_bounds = array<i64: 1, 1>, scalar_prefetch = 0 : i64, scratch_operands = 0 : i64, tpu.core_type = #tpu.core_type<tc>, window_params = [{transform_indices = @transform_0, window_bounds = array<i64: 8, 64>}, {pipeline_mode = #tpu.pipeline_mode<synchronous>, transform_indices = @transform_1, window_bounds = array<i64: 64, 128>}, {pipeline_mode = #tpu.pipeline_mode<synchronous>, transform_indices = @transform_2, window_bounds = array<i64: 1, 128>}, {transform_indices = @transform_3, window_bounds = array<i64: 8, 128>}]} {
    %c0 = arith.constant 0 : index
    %c0_0 = arith.constant 0 : index
    %0 = vector.load %arg2[%c0, %c0_0] : memref<8x64xf32, #tpu.memory_space<vmem>>, vector<8x64xf32>
    %c0_1 = arith.constant 0 : index
    %c0_2 = arith.constant 0 : index
    %1 = vector.load %arg3[%c0_1, %c0_2] : memref<64x128xf32, #tpu.memory_space<vmem>>, vector<64x128xf32>
    %cst = arith.constant dense<0.000000e+00> : vector<8x128xf32>
    %2 = tpu.matmul %0, %1, %cst {dimension_numbers = #tpu.dot_dimension_numbers<[1], [0], [0], [1], [0, 0, 1, 1], [], []>} : vector<8x64xf32>, vector<64x128xf32>, vector<8x128xf32> -> vector<8x128xf32>
    %c0_3 = arith.constant 0 : index
    %c0_4 = arith.constant 0 : index
    %3 = vector.load %arg4[%c0_3, %c0_4] : memref<1x128xf32, #tpu.memory_space<vmem>>, vector<1x128xf32>
    %4 = vector.broadcast %3 : vector<1x128xf32> to vector<8x128xf32>
    %5 = arith.addf %2, %4 : vector<8x128xf32>
    %c0_5 = arith.constant 0 : index
    %c0_6 = arith.constant 0 : index
    %6 = vector.load %arg5[%c0_5, %c0_6] : memref<8x128xf32, #tpu.memory_space<vmem>>, vector<8x128xf32>
    tpu.vector_store %arg5[%c0_5, %c0_6], %5 {strides = array<i32>} : memref<8x128xf32, #tpu.memory_space<vmem>>, vector<8x128xf32>,
    return
  }
  func.func @transform_0(%arg0: i32, %arg1: i32) -> (i32, i32) {
    %c0_i32 = arith.constant 0 : i32
    %c0_i32_0 = arith.constant 0 : i32
    return %arg0, %c0_i32 : i32, i32
  }
  func.func @transform_1(%arg0: i32, %arg1: i32) -> (i32, i32) {
    %c0_i32 = arith.constant 0 : i32
    %c0_i32_0 = arith.constant 0 : i32
    %c0_i32_1 = arith.constant 0 : i32
    return %c0_i32, %c0_i32_0 : i32, i32
  }
  func.func @transform_2(%arg0: i32, %arg1: i32) -> (i32, i32) {
    %c0_i32 = arith.constant 0 : i32
    %c0_i32_0 = arith.constant 0 : i32
    %c0_i32_1 = arith.constant 0 : i32
    return %c0_i32, %c0_i32_0 : i32, i32
  }
  func.func @transform_3(%arg0: i32, %arg1: i32) -> (i32, i32) {
    %c0_i32 = arith.constant 0 : i32
    return %arg0, %arg1 : i32, i32
  }
}

</mosaic_0001>

<llo_original>
// kernel: tpu_custom_call.1
$region0: #{tpu_custom_call.1}
  #allocation0 [shape = 'u32[]', space=smem, size = 0x4, offset = 0x4, fixed_abs, tag = 'smem constant byte address 0x4 - core index']
  #allocation1 [shape = 'u32[72,128]{1,0:T(1,128)}', space=vmem, size = 0x9000, scoped, tag = 'internal scratch']
  %s0 = inlined_call_operand.hbm [shape: f32[8,64], index: 0, kind: input, shape index: {}]
  %s1 = inlined_call_operand.hbm [shape: f32[64,128], index: 1, kind: input, shape index: {}]
  %s2 = inlined_call_operand.vmem [shape: f32[1,128], index: 2, kind: input, shape index: {}]
  %s3 = inlined_call_operand.hbm [shape: f32[8,128], index: 3, kind: output, shape index: {}]
  %s4 = sld [smem:[#allocation0]]
  $region30: #{tpu_custom_call.1} parent=0
    _
  %s6 = ssub.s32 1, %s4
  %s7 = scalar_select 0, %s6, %s4
  $region1: #{tpu_custom_call.1} parent=0
    #allocation2 [shape = 'u8[4096]{0}', space=vmem, size = 0x1000, scoped, tag = 'input window, operand 0, single buffered']
    #allocation3 [shape = 's32[1]{0}', space=sflag, size = 0x4, scoped, tag = 'scoped memory for tpu_custom_call.1']
    #allocation4 [shape = 's32[1]{0}', space=sflag, size = 0x4, scoped, tag = 'scoped memory for tpu_custom_call.1']
    #allocation5 [shape = 'u8[32768]{0}', space=vmem, size = 0x8000, scoped, tag = 'input window, operand 1, single buffered']
    #allocation6 [shape = 's32[1]{0}', space=sflag, size = 0x4, scoped, tag = 'scoped memory for tpu_custom_call.1']
    #allocation7 [shape = 'u8[4096]{0}', space=vmem, size = 0x1000, scoped, tag = 'output window, operand 0, single buffered']
    %8 = vsyncpa [#allocation3], 0
    %9 = vsyncpa [#allocation6], 0
    %10 = vsyncpa [#allocation4], 0
    // Predicated region
    $region2: #{tpu_custom_call.1} parent=1 // pred_check
      _
    $region3: #{tpu_custom_call.1} parent=1 // pred_check_branch
      %12 = sbr.rel (0) target = $region5
    $region4: #{tpu_custom_call.1} parent=1 // pred_region
      %14 = vsyncadd [#allocation3], 0
      %s16 = sshll.u32 %s0, 4
      %s17 = int_to_ptr.hbm [resolvable:$true] %s16
      %s18 = sshll.u32 [#allocation2], 4
      %s19 = int_to_ptr.vmem [resolvable:$true] %s18
      %21 = dma.hbm_to_vmem [thread:$0]  %s17, 128, %s19, [#allocation3]
    $region5: #{tpu_custom_call.1} parent=1 // pred_fallthru
      _
    // Predicated region
    $region6: #{tpu_custom_call.1} parent=1 // pred_check
      _
    $region7: #{tpu_custom_call.1} parent=1 // pred_check_branch
      %23 = sbr.rel (0) target = $region9
    $region8: #{tpu_custom_call.1} parent=1 // pred_region
      %25 = vsyncadd [#allocation6], 0
      %s26 = sshll.u32 %s1, 4
      %s27 = int_to_ptr.hbm [resolvable:$true] %s26
      %s28 = sshll.u32 [#allocation5], 4
      %s29 = int_to_ptr.vmem [resolvable:$true] %s28
      %34 = dma.hbm_to_vmem [thread:$0]  %s27, 1024, %s29, [#allocation6], 128, 128, 8
    $region9: #{tpu_custom_call.1} parent=1 // pred_fallthru
      _
    // Predicated region
    $region10: #{tpu_custom_call.1} parent=1 // pred_check
      _
    $region11: #{tpu_custom_call.1} parent=1 // pred_check_branch
      %36 = sbr.rel (0) target = $region13
    $region12: #{tpu_custom_call.1} parent=1 // pred_region
      _
    $region13: #{tpu_custom_call.1} parent=1 // pred_fallthru
      _
    // Predicated region
    $region14: #{tpu_custom_call.1} parent=1 // pred_check
      _
    $region15: #{tpu_custom_call.1} parent=1 // pred_check_branch
      %38 = sbr.rel (0) target = $region17
    $region16: #{tpu_custom_call.1} parent=1 // pred_region
      %40 = dma.done [#allocation3], 128
    $region17: #{tpu_custom_call.1} parent=1 // pred_fallthru
      _
    // Predicated region
    $region18: #{tpu_custom_call.1} parent=1 // pred_check
      _
    $region19: #{tpu_custom_call.1} parent=1 // pred_check_branch
      %42 = sbr.rel (0) target = $region21
    $region20: #{tpu_custom_call.1} parent=1 // pred_region
      %44 = dma.done [#allocation6], 1024
    $region21: #{tpu_custom_call.1} parent=1 // pred_fallthru
      _
    %v45 = vld [vmem:[#allocation2] sm:$0xff]
    %v46 = vld [vmem:[#allocation5] sm:$0xff]
    %v47 = vld [vmem:[#allocation5 + $0x8] sm:$0xff]
    %v48 = vld [vmem:[#allocation5 + $0x10] sm:$0xff]
    %v49 = vld [vmem:[#allocation5 + $0x18] sm:$0xff]
    %v50 = vld [vmem:[#allocation5 + $0x20] sm:$0xff]
    %v51 = vld [vmem:[#allocation5 + $0x28] sm:$0xff]
    %v52 = vld [vmem:[#allocation5 + $0x30] sm:$0xff]
    %v53 = vld [vmem:[#allocation5 + $0x38] sm:$0xff]
    %v54 = vld [vmem:[%s2] sm:$0x1]
    %v56 = vperm.slane %v54, 0
    %vm58 = vcmask 523264
    %v60 = vsel %vm58, %v45, 0
    %62 = vmatpush.msra.mxu0 0.0
    %63 = vmatpush.msra.mxu0 0.0
    %64 = vmatpush.msra.mxu0 0.0
    %65 = vmatpush.msra.mxu0 0.0
    %66 = vmatpush.msra.mxu0 0.0
    %67 = vmatpush.msra.mxu0 0.0
    %68 = vmatpush.msra.mxu0 0.0
    %69 = vmatpush.msra.mxu0 0.0
    %70 = vmatpush.msra.mxu0 %v53
    %71 = vmatpush.msra.mxu0 %v52
    %72 = vmatpush.msra.mxu0 %v51
    %73 = vmatpush.msra.mxu0 %v50
    %74 = vmatpush.msra.mxu0 %v49
    %75 = vmatpush.msra.mxu0 %v48
    %76 = vmatpush.msra.mxu0 %v47
    %77 = vmatpush.msra.mxu0 %v46
    %78 = vmatmul.f32.gmra.mxu0 %v60
    %v79 = vpop.f32.mrf.mxu0
    %v80 = vadd.f32 %v56, %v79
    %81 = vdwg.mxu0
    %82 = vst [vmem:[#allocation7] sm:$0xff] %v80
    // Predicated region
    $region22: #{tpu_custom_call.1} parent=1 // pred_check
      _
    $region23: #{tpu_custom_call.1} parent=1 // pred_check_branch
      %84 = sbr.rel (0) target = $region25
    $region24: #{tpu_custom_call.1} parent=1 // pred_region
      %86 = vsyncadd [#allocation4], 0
      %s88 = sshll.u32 [#allocation7], 4
      %s89 = int_to_ptr.vmem [resolvable:$true] %s88
      %s90 = sshll.u32 %s3, 4
      %s91 = int_to_ptr.hbm [resolvable:$true] %s90
      %93 = dma.vmem_to_hbm [thread:$0]  %s89, 128, %s91, [#allocation4]
    $region25: #{tpu_custom_call.1} parent=1 // pred_fallthru
      _
    // Predicated region
    $region26: #{tpu_custom_call.1} parent=1 // pred_check
      _
    $region27: #{tpu_custom_call.1} parent=1 // pred_check_branch
      %95 = sbr.rel (0) target = $region29
    $region28: #{tpu_custom_call.1} parent=1 // pred_region
      %97 = dma.done [#allocation4], 128
    $region29: #{tpu_custom_call.1} parent=1 // pred_fallthru
      _
    %98 = vsyncpa [#allocation3], 1
    %99 = vsyncpa [#allocation6], 1
    %100 = vsyncpa [#allocation4], 1

// kernel: tpu_custom_call.1
$region0: #{tpu_custom_call.1}
  #allocation0 [shape = 'u32[]', space=smem, size = 0x4, offset = 0x4, fixed_abs, tag = 'smem constant byte address 0x4 - core index']
  #allocation1 [shape = 'u32[72,128]{1,0:T(1,128)}', space=vmem, size = 0x9000, scoped, tag = 'internal scratch']
  %s0 = inlined_call_operand.hbm [shape: f32[8,64], index: 0, kind: input, shape index: {}]
  %s1 = inlined_call_operand.hbm [shape: f32[64,128], index: 1, kind: input, shape index: {}]
  %s2 = inlined_call_operand.vmem [shape: f32[1,128], index: 2, kind: input, shape index: {}]
  %s3 = inlined_call_operand.hbm [shape: f32[8,128], index: 3, kind: output, shape index: {}]
  %s4 = sld [smem:[#allocation0]]
  $region30: #{tpu_custom_call.1} parent=0
    _
  %s6 = ssub.s32 1, %s4
  %s7 = scalar_select 0, %s6, %s4
  $region1: #{tpu_custom_call.1} parent=0
    #allocation2 [shape = 'u8[4096]{0}', space=vmem, size = 0x1000, scoped, tag = 'input window, operand 0, single buffered']
    #allocation3 [shape = 's32[1]{0}', space=sflag, size = 0x4, scoped, tag = 'scoped memory for tpu_custom_call.1']
    #allocation4 [shape = 's32[1]{0}', space=sflag, size = 0x4, scoped, tag = 'scoped memory for tpu_custom_call.1']
    #allocation5 [shape = 'u8[32768]{0}', space=vmem, size = 0x8000, scoped, tag = 'input window, operand 1, single buffered']
    #allocation6 [shape = 's32[1]{0}', space=sflag, size = 0x4, scoped, tag = 'scoped memory for tpu_custom_call.1']
    #allocation7 [shape = 'u8[4096]{0}', space=vmem, size = 0x1000, scoped, tag = 'output window, operand 0, single buffered']
    %8 = vsyncpa [#allocation3], 0
    %9 = vsyncpa [#allocation6], 0
    %10 = vsyncpa [#allocation4], 0
    // Predicated region
    $region2: #{tpu_custom_call.1} parent=1 // pred_check
      _
    $region3: #{tpu_custom_call.1} parent=1 // pred_check_branch
      %12 = sbr.rel (0) target = $region5
    $region4: #{tpu_custom_call.1} parent=1 // pred_region
      %14 = vsyncadd [#allocation3], 0
      %s16 = sshll.u32 %s0, 4
      %s17 = int_to_ptr.hbm [resolvable:$true] %s16
      %s18 = sshll.u32 [#allocation2], 4
      %s19 = int_to_ptr.vmem [resolvable:$true] %s18
      %21 = dma.hbm_to_vmem [thread:$0]  %s17, 128, %s19, [#allocation3]
    $region5: #{tpu_custom_call.1} parent=1 // pred_fallthru
      _
    // Predicated region
    $region6: #{tpu_custom_call.1} parent=1 // pred_check
      _
    $region7: #{tpu_custom_call.1} parent=1 // pred_check_branch
      %23 = sbr.rel (0) target = $region9
    $region8: #{tpu_custom_call.1} parent=1 // pred_region
      %25 = vsyncadd [#allocation6], 0
      %s26 = sshll.u32 %s1, 4
      %s27 = int_to_ptr.hbm [resolvable:$true] %s26
      %s28 = sshll.u32 [#allocation5], 4
      %s29 = int_to_ptr.vmem [resolvable:$true] %s28
      %34 = dma.hbm_to_vmem [thread:$0]  %s27, 1024, %s29, [#allocation6], 128, 128, 8
    $region9: #{tpu_custom_call.1} parent=1 // pred_fallthru
      _
    // Predicated region
    $region10: #{tpu_custom_call.1} parent=1 // pred_check
      _
    $region11: #{tpu_custom_call.1} parent=1 // pred_check_branch
      %36 = sbr.rel (0) target = $region13
    $region12: #{tpu_custom_call.1} parent=1 // pred_region
      _
    $region13: #{tpu_custom_call.1} parent=1 // pred_fallthru
      _
    // Predicated region
    $region14: #{tpu_custom_call.1} parent=1 // pred_check
      _
    $region15: #{tpu_custom_call.1} parent=1 // pred_check_branch
      %38 = sbr.rel (0) target = $region17
    $region16: #{tpu_custom_call.1} parent=1 // pred_region
      %40 = dma.done [#allocation3], 128
    $region17: #{tpu_custom_call.1} parent=1 // pred_fallthru
      _
    // Predicated region
    $region18: #{tpu_custom_call.1} parent=1 // pred_check
      _
    $region19: #{tpu_custom_call.1} parent=1 // pred_check_branch
      %42 = sbr.rel (0) target = $region21
    $region20: #{tpu_custom_call.1} parent=1 // pred_region
      %44 = dma.done [#allocation6], 1024
    $region21: #{tpu_custom_call.1} parent=1 // pred_fallthru
      _
    %v45 = vld [vmem:[#allocation2] sm:$0xff]
    %v46 = vld [vmem:[#allocation5] sm:$0xff]
    %v47 = vld [vmem:[#allocation5 + $0x8] sm:$0xff]
    %v48 = vld [vmem:[#allocation5 + $0x10] sm:$0xff]
    %v49 = vld [vmem:[#allocation5 + $0x18] sm:$0xff]
    %v50 = vld [vmem:[#allocation5 + $0x20] sm:$0xff]
    %v51 = vld [vmem:[#allocation5 + $0x28] sm:$0xff]
    %v52 = vld [vmem:[#allocation5 + $0x30] sm:$0xff]
    %v53 = vld [vmem:[#allocation5 + $0x38] sm:$0xff]
    %v54 = vld [vmem:[%s2] sm:$0x1]
    %v56 = vperm.slane %v54, 0
    %vm58 = vcmask 523264
    %v60 = vsel %vm58, %v45, 0
    %62 = vmatpush.msra.mxu0 0.0
    %63 = vmatpush.msra.mxu0 0.0
    %64 = vmatpush.msra.mxu0 0.0
    %65 = vmatpush.msra.mxu0 0.0
    %66 = vmatpush.msra.mxu0 0.0
    %67 = vmatpush.msra.mxu0 0.0
    %68 = vmatpush.msra.mxu0 0.0
    %69 = vmatpush.msra.mxu0 0.0
    %70 = vmatpush.msra.mxu0 %v53
    %71 = vmatpush.msra.mxu0 %v52
    %72 = vmatpush.msra.mxu0 %v51
    %73 = vmatpush.msra.mxu0 %v50
    %74 = vmatpush.msra.mxu0 %v49
    %75 = vmatpush.msra.mxu0 %v48
    %76 = vmatpush.msra.mxu0 %v47
    %77 = vmatpush.msra.mxu0 %v46
    %78 = vmatmul.f32.gmra.mxu0 %v60
    %v79 = vpop.f32.mrf.mxu0
    %v80 = vadd.f32 %v56, %v79
    %81 = vdwg.mxu0
    %82 = vst [vmem:[#allocation7] sm:$0xff] %v80
    // Predicated region
    $region22: #{tpu_custom_call.1} parent=1 // pred_check
      _
    $region23: #{tpu_custom_call.1} parent=1 // pred_check_branch
      %84 = sbr.rel (0) target = $region25
    $region24: #{tpu_custom_call.1} parent=1 // pred_region
      %86 = vsyncadd [#allocation4], 0
      %s88 = sshll.u32 [#allocation7], 4
      %s89 = int_to_ptr.vmem [resolvable:$true] %s88
      %s90 = sshll.u32 %s3, 4
      %s91 = int_to_ptr.hbm [resolvable:$true] %s90
      %93 = dma.vmem_to_hbm [thread:$0]  %s89, 128, %s91, [#allocation4]
    $region25: #{tpu_custom_call.1} parent=1 // pred_fallthru
      _
    // Predicated region
    $region26: #{tpu_custom_call.1} parent=1 // pred_check
      _
    $region27: #{tpu_custom_call.1} parent=1 // pred_check_branch
      %95 = sbr.rel (0) target = $region29
    $region28: #{tpu_custom_call.1} parent=1 // pred_region
      %97 = dma.done [#allocation4], 128
    $region29: #{tpu_custom_call.1} parent=1 // pred_fallthru
      _
    %98 = vsyncpa [#allocation3], 1
    %99 = vsyncpa [#allocation6], 1
    %100 = vsyncpa [#allocation4], 1

</llo_original>
